<compile_context>
chip_gen: v6e
topology: v6e:2x2x1
jax: 0.10.0
libtpu: 0.0.40
codegen_flags: <defaults>
</compile_context>

<pallas_src>
from functools import partial

import jax
import jax.numpy as jnp
from jax.experimental import pallas as pl
from jax.experimental.pallas import tpu as pltpu


def _attgnn_kernel(feat_ref, sup_ref, wmap_ref, ut_ref, vt_ref, wagg_ref,
                   bias_ref, out_ref, *, mm_dtype):
    BB, N, Din = feat_ref.shape
    Dgat = wmap_ref.shape[1]
    Dout = wagg_ref.shape[1]
    bias = bias_ref[0]                                   # scalar from SMEM

    # ---------------- GAT layer ----------------
    # One MXU pass over all BB graphs: (BB*N, Din) @ (Din, Dgat).
    feat_flat = feat_ref[...].reshape(BB * N, Din)
    fm_flat = jnp.dot(feat_flat, wmap_ref[...],
                      preferred_element_type=jnp.float32)
    fm = fm_flat.reshape(BB, N, Dgat)                    # (BB, N, Dgat)

    # Rank-1 projections with no transpose: contract feat_map's last dim
    # against U^T / V^T, so the row/column forms come straight off the MXU.
    ut = jnp.broadcast_to(ut_ref[...].reshape(1, 1, Dgat), (BB, 1, Dgat))
    vt = jnp.broadcast_to(vt_ref[...].reshape(1, 1, Dgat), (BB, 1, Dgat))
    u_row = jnp.einsum('bod,bnd->bon', ut, fm,
                       preferred_element_type=jnp.float32)       # (BB,1,N)
    v_col = jnp.einsum('bnd,bod->bno', fm, vt,
                       preferred_element_type=jnp.float32)       # (BB,N,1)

    # att[b, j, i] = tanh(fm[b,i].U + fm[b,j].V + bias)
    att = jnp.tanh(u_row + v_col + bias)                         # (BB,N,N)

    sup = sup_ref[...]                                           # (BB,N,N)
    row = jax.lax.broadcasted_iota(jnp.int32, (BB, N, N), 1)
    col = jax.lax.broadcasted_iota(jnp.int32, (BB, N, N), 2)
    # keep == ((sup + I) > 0) for a non-negative normalized adjacency.
    keep = (sup > 0.0) | (row == col)

    # Softmax over the key axis, mask fused into the exp. tanh output is in
    # [-1,1] so exp cannot overflow -> max subtraction skipped. The diagonal is
    # always kept so every row sum >= exp(-1) (no 0-division).
    e = jnp.where(keep, jnp.exp(att), 0.0)
    s = jnp.sum(e, axis=2, keepdims=True)                        # (BB,N,1)
    r = pl.reciprocal(s, approx=True)                            # EUP
    r = r * (2.0 - s * r)                                        # Newton -> f32
    p = e * r

    # feat_out = tanh(att @ feat_map)  -- first N^2-FLOP matmul.
    gat = jnp.tanh(jnp.einsum('bqk,bkd->bqd',
                              p.astype(mm_dtype), fm.astype(mm_dtype),
                              preferred_element_type=jnp.float32))

    # ---------------- GCN layer ----------------
    # (sup + I) @ gat == sup @ gat + gat  -- second N^2-FLOP matmul.
    feat_agg = jnp.einsum('bnk,bkd->bnd',
                          sup.astype(mm_dtype), gat.astype(mm_dtype),
                          preferred_element_type=jnp.float32) + gat

    # One MXU pass over all BB graphs for the output projection.
    agg = jnp.maximum(
        jnp.dot(feat_agg.reshape(BB * N, Dgat), wagg_ref[...],
                preferred_element_type=jnp.float32),
        0.0)                                                     # (BB*N, Dout)

    # F.normalize(agg, dim=1, p=2): x / max(||x||, 1e-12) via one EUP rsqrt.
    sumsq = jnp.sum(agg * agg, axis=1, keepdims=True)
    rn = jax.lax.rsqrt(jnp.maximum(sumsq, 1e-24))
    out_ref[...] = (agg * rn).reshape(BB, N, Dout)
    # TODO(synk): nn.Dropout is identity in eval mode; training-mode dropout
    # is not implemented.


def attgnn_forward(feat, sup, w_map, bias, u, v, w_agg, *,
                   graphs_per_block=None, use_bf16_matmuls=False):
    """feat: (B,N,Din) or (N,Din); sup: (B,N,N) or (N,N). Returns matching batch."""
    single = feat.ndim == 2
    if single:
        feat, sup = feat[None], sup[None]
    feat = feat.astype(jnp.float32)
    sup = sup.astype(jnp.float32)
    B, N, Din = feat.shape
    Dgat, Dout = w_agg.shape

    # Graphs per grid step: amortize per-step overhead + fill MXU sublanes,
    # keep >= 2 balanced steps (v7x megacore), stay within a VMEM budget.
    if graphs_per_block is None:
        per_graph_bytes = 4 * (6 * N * N + 8 * N * max(Din, Dgat, Dout))
        cap = max(1, (24 * 1024 * 1024) // max(per_graph_bytes, 1))
        graphs_per_block = max(1, min(cap, B // 2)) if B >= 2 else 1
    BB = int(graphs_per_block)
    num_blocks = pl.cdiv(B, BB)
    Bp = num_blocks * BB
    if Bp != B:
        pad = Bp - B
        feat = jnp.pad(feat, ((0, pad), (0, 0), (0, 0)))
        sup = jnp.pad(sup, ((0, pad), (0, 0), (0, 0)))

    w_map = w_map.astype(jnp.float32)
    w_agg = w_agg.astype(jnp.float32)
    u_t = u.astype(jnp.float32).reshape(1, Dgat)     # U^T : (1, Dgat)
    v_t = v.astype(jnp.float32).reshape(1, Dgat)     # V^T : (1, Dgat)
    bias1 = bias.astype(jnp.float32).reshape(1)      # scalar -> SMEM

    # VMEM budget: double-buffered IO blocks + weights + in-kernel temps,
    # 2x headroom; clamp to [32 MiB, 64 MiB] (safe on v5e/v6e/v7x).
    live = 4 * (2 * BB * N * (Din + N + Dout)
                + Din * Dgat + Dgat * Dout + 2 * Dgat
                + 4 * BB * N * N + 4 * BB * N * Dgat)
    vmem_limit = int(min(max(2 * live, 32 * 1024 * 1024), 64 * 1024 * 1024))

    flops_per_graph = 2 * (N * Din * Dgat + 2 * N * Dgat
                           + 2 * N * N * Dgat + N * Dgat * Dout)
    cost = pl.CostEstimate(
        flops=int(Bp * flops_per_graph),
        transcendentals=int(Bp * (2 * N * N + N * Dgat)),
        bytes_accessed=int(4 * (feat.size + sup.size + w_map.size
                                + 2 * Dgat + w_agg.size + Bp * N * Dout)),
    )

    kernel = partial(_attgnn_kernel,
                     mm_dtype=jnp.bfloat16 if use_bf16_matmuls else jnp.float32)

    out = pl.pallas_call(
        kernel,
        out_shape=jax.ShapeDtypeStruct((Bp, N, Dout), jnp.float32),
        grid=(num_blocks,),
        in_specs=[
            pl.BlockSpec((BB, N, Din), lambda b: (b, 0, 0)),
            pl.BlockSpec((BB, N, N), lambda b: (b, 0, 0)),
            pl.BlockSpec((Din, Dgat), lambda b: (0, 0)),
            pl.BlockSpec((1, Dgat), lambda b: (0, 0)),
            pl.BlockSpec((1, Dgat), lambda b: (0, 0)),
            pl.BlockSpec((Dgat, Dout), lambda b: (0, 0)),
            pl.BlockSpec(memory_space=pltpu.MemorySpace.SMEM),
        ],
        out_specs=pl.BlockSpec((BB, N, Dout), lambda b: (b, 0, 0)),
        compiler_params=pltpu.CompilerParams(
            dimension_semantics=("parallel",),
            vmem_limit_bytes=vmem_limit),
        cost_estimate=cost,
    )(feat, sup, w_map, u_t, v_t, w_agg, bias1)

    if Bp != B:
        out = out[:B]
    return out[0] if single else out


def xavier_uniform(key, shape):
    fan_in, fan_out = shape[0], shape[1]
    bound = (6.0 / (fan_in + fan_out)) ** 0.5
    return jax.random.uniform(key, shape, jnp.float32, -bound, bound)


def reference_forward(feat, sup, w_map, bias, u, v, w_agg):
    """Pure-JAX single-graph reference mirroring the PyTorch forward."""
    n = sup.shape[0]
    sup_i = sup + jnp.eye(n, dtype=sup.dtype)
    feat_map = feat @ w_map
    uu = feat_map @ u               # (N,1)
    vv = feat_map @ v               # (N,1)
    att = jnp.tanh(uu.T + vv + bias[0])
    att = jnp.where(sup_i > 0, att, -100.0)
    att = jax.nn.softmax(att, axis=1)
    gat = jnp.tanh(att @ feat_map)
    agg = jax.nn.relu((sup_i @ gat) @ w_agg)
    norm = jnp.maximum(jnp.linalg.norm(agg, axis=1, keepdims=True), 1e-12)
    return agg / norm


if __name__ == "__main__":
    # Small shapes consistent with the module; a batch of graphs fills the grid
    # (B=4, BB=2 -> 2 balanced grid steps).
    B = 4                 # number of graphs (batched over the grid)
    N = 8                 # number of graph nodes
    GAT_IN = 16           # GAT_input_dim
    GAT_OUT = 32          # GAT_output_dim
    GCN_OUT = 32          # GCN_output_dim

    key = jax.random.PRNGKey(0)
    k_feat, k_sup, k_mask, k_wmap, k_u, k_v, k_wagg = jax.random.split(key, 7)

    feat = jax.random.normal(k_feat, (B, N, GAT_IN), jnp.float32)
    # Sparse-ish non-negative support (normalized adjacency surrogate)
    adj = jax.random.uniform(k_sup, (B, N, N), jnp.float32)
    mask = (jax.random.uniform(k_mask, (B, N, N)) > 0.5).astype(jnp.float32)
    sup = adj * mask

    # GATDense params
    w_map = xavier_uniform(k_wmap, (GAT_IN, GAT_OUT))
    bias = jnp.zeros((1,), jnp.float32)
    u = xavier_uniform(k_u, (GAT_OUT, 1))
    v = xavier_uniform(k_v, (GAT_OUT, 1))
    # GCNDense params
    w_agg = xavier_uniform(k_wagg, (GAT_OUT, GCN_OUT))

    out = attgnn_forward(feat, sup, w_map, bias, u, v, w_agg)
    out = jax.block_until_ready(out)

    ref = jax.vmap(
        lambda f, s: reference_forward(f, s, w_map, bias, u, v, w_agg)
    )(feat, sup)

    assert out.shape == (B, N, GCN_OUT)
    assert jnp.allclose(out, ref, atol=3e-5, rtol=3e-5), "mismatch vs reference"

    print("KERNEL_OK")
</pallas_src>

<mosaic_0001>
module attributes {stable_mosaic.version = 11 : i64} {
  func.func @_attgnn_kernel(%arg0: i32, %arg1: memref<2x8x16xf32, #tpu.memory_space<vmem>>, %arg2: memref<2x8x8xf32, #tpu.memory_space<vmem>>, %arg3: memref<16x32xf32, #tpu.memory_space<vmem>>, %arg4: memref<1x32xf32, #tpu.memory_space<vmem>>, %arg5: memref<1x32xf32, #tpu.memory_space<vmem>>, %arg6: memref<32x32xf32, #tpu.memory_space<vmem>>, %arg7: memref<1xf32, #tpu.memory_space<smem>>, %arg8: memref<2x8x32xf32, #tpu.memory_space<vmem>>) attributes {dimension_semantics = [#tpu.dimension_semantics<parallel>], iteration_bounds = array<i64: 2>, scalar_prefetch = 0 : i64, scratch_operands = 0 : i64, tpu.core_type = #tpu.core_type<tc>, window_params = [{transform_indices = @transform_0, window_bounds = array<i64: 2, 8, 16>}, {transform_indices = @transform_1, window_bounds = array<i64: 2, 8, 8>}, {pipeline_mode = #tpu.pipeline_mode<synchronous>, transform_indices = @transform_2, window_bounds = array<i64: 16, 32>}, {pipeline_mode = #tpu.pipeline_mode<synchronous>, transform_indices = @transform_3, window_bounds = array<i64: 1, 32>}, {pipeline_mode = #tpu.pipeline_mode<synchronous>, transform_indices = @transform_4, window_bounds = array<i64: 1, 32>}, {pipeline_mode = #tpu.pipeline_mode<synchronous>, transform_indices = @transform_5, window_bounds = array<i64: 32, 32>}, {transform_indices = @transform_6, window_bounds = array<i64: 1>}, {transform_indices = @transform_7, window_bounds = array<i64: 2, 8, 32>}]} {
    %c0 = arith.constant 0 : index
    %0 = memref.load %arg7[%c0] : memref<1xf32, #tpu.memory_space<smem>>
    %c0_0 = arith.constant 0 : index
    %c0_1 = arith.constant 0 : index
    %c0_2 = arith.constant 0 : index
    %1 = vector.load %arg1[%c0_0, %c0_1, %c0_2] : memref<2x8x16xf32, #tpu.memory_space<vmem>>, vector<2x8x16xf32>
    %2 = vector.shape_cast %1 : vector<2x8x16xf32> to vector<16x16xf32>
    %c0_3 = arith.constant 0 : index
    %c0_4 = arith.constant 0 : index
    %3 = vector.load %arg3[%c0_3, %c0_4] : memref<16x32xf32, #tpu.memory_space<vmem>>, vector<16x32xf32>
    %cst = arith.constant dense<0.000000e+00> : vector<16x32xf32>
    %4 = tpu.matmul %2, %3, %cst {dimension_numbers = #tpu.dot_dimension_numbers<[1], [0], [0], [1], [0, 0, 1, 1], [], []>} : vector<16x16xf32>, vector<16x32xf32>, vector<16x32xf32> -> vector<16x32xf32>
    %5 = vector.shape_cast %4 : vector<16x32xf32> to vector<2x8x32xf32>
    %c0_5 = arith.constant 0 : index
    %c0_6 = arith.constant 0 : index
    %6 = vector.load %arg4[%c0_5, %c0_6] : memref<1x32xf32, #tpu.memory_space<vmem>>, vector<1x32xf32>
    %7 = vector.shape_cast %6 : vector<1x32xf32> to vector<1x1x32xf32>
    %8 = vector.shape_cast %7 : vector<1x1x32xf32> to vector<1x1x32xf32>
    %9 = vector.broadcast %8 : vector<1x1x32xf32> to vector<2x1x32xf32>
    %c0_7 = arith.constant 0 : index
    %c0_8 = arith.constant 0 : index
    %10 = vector.load %arg5[%c0_7, %c0_8] : memref<1x32xf32, #tpu.memory_space<vmem>>, vector<1x32xf32>
    %11 = vector.shape_cast %10 : vector<1x32xf32> to vector<1x1x32xf32>
    %12 = vector.shape_cast %11 : vector<1x1x32xf32> to vector<1x1x32xf32>
    %13 = vector.broadcast %12 : vector<1x1x32xf32> to vector<2x1x32xf32>
    "tpu.trace_start"() <{level = 10 : i32, message = "bod,bnd->bon"}> : () -> ()
    %cst_9 = arith.constant dense<0.000000e+00> : vector<2x1x8xf32>
    %14 = tpu.matmul %9, %5, %cst_9 {dimension_numbers = #tpu.dot_dimension_numbers<[2], [2], [1], [1], [0, 0, 0, 1, 1, 1], [0], [0]>} : vector<2x1x32xf32>, vector<2x8x32xf32>, vector<2x1x8xf32> -> vector<2x1x8xf32>
    "tpu.trace_stop"() : () -> ()
    "tpu.trace_start"() <{level = 10 : i32, message = "bnd,bod->bno"}> : () -> ()
    %cst_10 = arith.constant dense<0.000000e+00> : vector<2x8x1xf32>
    %15 = tpu.matmul %5, %13, %cst_10 {dimension_numbers = #tpu.dot_dimension_numbers<[2], [2], [1], [1], [0, 0, 0, 1, 1, 1], [0], [0]>} : vector<2x8x32xf32>, vector<2x1x32xf32>, vector<2x8x1xf32> -> vector<2x8x1xf32>
    "tpu.trace_stop"() : () -> ()
    %16 = vector.broadcast %14 : vector<2x1x8xf32> to vector<2x8x8xf32>
    %17 = vector.broadcast %15 : vector<2x8x1xf32> to vector<2x8x8xf32>
    %18 = arith.addf %16, %17 : vector<2x8x8xf32>
    %19 = vector.broadcast %0 : f32 to vector<2x8x8xf32>
    %20 = arith.addf %18, %19 : vector<2x8x8xf32>
    %21 = math.tanh %20 : vector<2x8x8xf32>
    %c0_11 = arith.constant 0 : index
    %c0_12 = arith.constant 0 : index
    %c0_13 = arith.constant 0 : index
    %22 = vector.load %arg2[%c0_11, %c0_12, %c0_13] : memref<2x8x8xf32, #tpu.memory_space<vmem>>, vector<2x8x8xf32>
    %23 = tpu.iota {dimensions = array<i32: 1>} : vector<2x8x8xi32>
    %24 = tpu.iota {dimensions = array<i32: 2>} : vector<2x8x8xi32>
    %cst_14 = arith.constant 0.000000e+00 : f32
    %25 = vector.broadcast %cst_14 : f32 to vector<2x8x8xf32>
    %26 = arith.cmpf ogt, %22, %25 : vector<2x8x8xf32>
    %27 = arith.cmpi eq, %23, %24 : vector<2x8x8xi32>
    %28 = arith.ori %26, %27 : vector<2x8x8xi1>
    %29 = math.exp %21 : vector<2x8x8xf32>
    %cst_15 = arith.constant 0.000000e+00 : f32
    %30 = vector.broadcast %cst_15 : f32 to vector<2x8x8xf32>
    %31 = arith.select %28, %29, %30 : vector<2x8x8xi1>, vector<2x8x8xf32>
    %cst_16 = arith.constant dense<0.000000e+00> : vector<2x8xf32>
    %32 = vector.multi_reduction <add>, %31, %cst_16 [2] : vector<2x8x8xf32> to vector<2x8xf32>
    %33 = vector.shape_cast %32 : vector<2x8xf32> to vector<2x8x1xf32>
    %34 = tpu.reciprocal %33 {approx = true} : vector<2x8x1xf32> -> vector<2x8x1xf32>
    %35 = arith.mulf %33, %34 : vector<2x8x1xf32>
    %cst_17 = arith.constant 2.000000e+00 : f32
    %36 = vector.broadcast %cst_17 : f32 to vector<2x8x1xf32>
    %37 = arith.subf %36, %35 : vector<2x8x1xf32>
    %38 = arith.mulf %34, %37 : vector<2x8x1xf32>
    %39 = vector.broadcast %38 : vector<2x8x1xf32> to vector<2x8x8xf32>
    %40 = arith.mulf %31, %39 : vector<2x8x8xf32>
    "tpu.trace_start"() <{level = 10 : i32, message = "bqk,bkd->bqd"}> : () -> ()
    %cst_18 = arith.constant dense<0.000000e+00> : vector<2x8x32xf32>
    %41 = tpu.matmul %40, %5, %cst_18 {dimension_numbers = #tpu.dot_dimension_numbers<[2], [1], [1], [2], [0, 0, 0, 1, 1, 2], [0], [0]>} : vector<2x8x8xf32>, vector<2x8x32xf32>, vector<2x8x32xf32> -> vector<2x8x32xf32>
    "tpu.trace_stop"() : () -> ()
    %42 = math.tanh %41 : vector<2x8x32xf32>
    "tpu.trace_start"() <{level = 10 : i32, message = "bnk,bkd->bnd"}> : () -> ()
    %cst_19 = arith.constant dense<0.000000e+00> : vector<2x8x32xf32>
    %43 = tpu.matmul %22, %42, %cst_19 {dimension_numbers = #tpu.dot_dimension_numbers<[2], [1], [1], [2], [0, 0, 0, 1, 1, 2], [0], [0]>} : vector<2x8x8xf32>, vector<2x8x32xf32>, vector<2x8x32xf32> -> vector<2x8x32xf32>
    "tpu.trace_stop"() : () -> ()
    %44 = arith.addf %43, %42 : vector<2x8x32xf32>
    %45 = vector.shape_cast %44 : vector<2x8x32xf32> to vector<16x32xf32>
    %c0_20 = arith.constant 0 : index
    %c0_21 = arith.constant 0 : index
    %46 = vector.load %arg6[%c0_20, %c0_21] : memref<32x32xf32, #tpu.memory_space<vmem>>, vector<32x32xf32>
    %cst_22 = arith.constant dense<0.000000e+00> : vector<16x32xf32>
    %47 = tpu.matmul %45, %46, %cst_22 {dimension_numbers = #tpu.dot_dimension_numbers<[1], [0], [0], [1], [0, 0, 1, 1], [], []>} : vector<16x32xf32>, vector<32x32xf32>, vector<16x32xf32> -> vector<16x32xf32>
    %cst_23 = arith.constant 0.000000e+00 : f32
    %48 = vector.broadcast %cst_23 : f32 to vector<16x32xf32>
    %49 = arith.maximumf %47, %48 : vector<16x32xf32>
    %50 = arith.mulf %49, %49 : vector<16x32xf32>
    %cst_24 = arith.constant dense<0.000000e+00> : vector<16xf32>
    %51 = vector.multi_reduction <add>, %50, %cst_24 [1] : vector<16x32xf32> to vector<16xf32>
    %52 = vector.shape_cast %51 : vector<16xf32> to vector<16x1xf32>
    %cst_25 = arith.constant 1.000000e-24 : f32
    %53 = vector.broadcast %cst_25 : f32 to vector<16x1xf32>
    %54 = arith.maximumf %52, %53 : vector<16x1xf32>
    %55 = math.rsqrt %54 : vector<16x1xf32>
    %56 = vector.broadcast %55 : vector<16x1xf32> to vector<16x32xf32>
    %57 = arith.mulf %49, %56 : vector<16x32xf32>
    %58 = vector.shape_cast %57 : vector<16x32xf32> to vector<2x8x32xf32>
    %c0_26 = arith.constant 0 : index
    %c0_27 = arith.constant 0 : index
    %c0_28 = arith.constant 0 : index
    %59 = vector.load %arg8[%c0_26, %c0_27, %c0_28] : memref<2x8x32xf32, #tpu.memory_space<vmem>>, vector<2x8x32xf32>
    tpu.vector_store %arg8[%c0_26, %c0_27, %c0_28], %58 {strides = array<i32>} : memref<2x8x32xf32, #tpu.memory_space<vmem>>, vector<2x8x32xf32>,
    return
  }
  func.func @transform_0(%arg0: i32) -> (i32, i32, i32) {
    %c0_i32 = arith.constant 0 : i32
    %c0_i32_0 = arith.constant 0 : i32
    %c0_i32_1 = arith.constant 0 : i32
    return %arg0, %c0_i32, %c0_i32_0 : i32, i32, i32
  }
  func.func @transform_1(%arg0: i32) -> (i32, i32, i32) {
    %c0_i32 = arith.constant 0 : i32
    %c0_i32_0 = arith.constant 0 : i32
    %c0_i32_1 = arith.constant 0 : i32
    return %arg0, %c0_i32, %c0_i32_0 : i32, i32, i32
  }
  func.func @transform_2(%arg0: i32) -> (i32, i32) {
    %c0_i32 = arith.constant 0 : i32
    %c0_i32_0 = arith.constant 0 : i32
    %c0_i32_1 = arith.constant 0 : i32
    return %c0_i32, %c0_i32_0 : i32, i32
  }
  func.func @transform_3(%arg0: i32) -> (i32, i32) {
    %c0_i32 = arith.constant 0 : i32
    %c0_i32_0 = arith.constant 0 : i32
    %c0_i32_1 = arith.constant 0 : i32
    return %c0_i32, %c0_i32_0 : i32, i32
  }
  func.func @transform_4(%arg0: i32) -> (i32, i32) {
    %c0_i32 = arith.constant 0 : i32
    %c0_i32_0 = arith.constant 0 : i32
    %c0_i32_1 = arith.constant 0 : i32
    return %c0_i32, %c0_i32_0 : i32, i32
  }
  func.func @transform_5(%arg0: i32) -> (i32, i32) {
    %c0_i32 = arith.constant 0 : i32
    %c0_i32_0 = arith.constant 0 : i32
    %c0_i32_1 = arith.constant 0 : i32
    return %c0_i32, %c0_i32_0 : i32, i32
  }
  func.func @transform_6(%arg0: i32) -> i32 {
    %c0_i32 = arith.constant 0 : i32
    %c0_i32_0 = arith.constant 0 : i32
    return %c0_i32 : i32
  }
  func.func @transform_7(%arg0: i32) -> (i32, i32, i32) {
    %c0_i32 = arith.constant 0 : i32
    %c0_i32_0 = arith.constant 0 : i32
    %c0_i32_1 = arith.constant 0 : i32
    return %arg0, %c0_i32, %c0_i32_0 : i32, i32, i32
  }
}

</mosaic_0001>

<llo_original>
// kernel: tpu_custom_call.1
$region0: #{tpu_custom_call.1}
  #allocation0 [shape = 'u32[]', space=smem, size = 0x4, offset = 0x4, fixed_abs, tag = 'smem constant byte address 0x4 - core index']
  #allocation1 [shape = 'u32[144,128]{1,0:T(1,128)}', space=vmem, size = 0x12000, scoped, tag = 'internal scratch']
  #allocation2 [shape = 'f32[1]{0:T(128)S(6)}', space=smem, size = 0x200, scoped, tag = 'scoped memory for tpu_custom_call.1']
  %s0 = inlined_call_operand.hbm [shape: f32[4,8,16], index: 0, kind: input, shape index: {}]
  %s1 = inlined_call_operand.hbm [shape: f32[4,8,8], index: 1, kind: input, shape index: {}]
  %s2 = inlined_call_operand.hbm [shape: f32[16,32], index: 2, kind: input, shape index: {}]
  %s3 = inlined_call_operand.vmem [shape: f32[1,32], index: 3, kind: input, shape index: {}]
  %s4 = inlined_call_operand.vmem [shape: f32[1,32], index: 4, kind: input, shape index: {}]
  %s5 = inlined_call_operand.hbm [shape: f32[32,32], index: 5, kind: input, shape index: {}]
  %s6 = inlined_call_operand.<no memory space> [shape: f32[1], index: 6, kind: input, shape index: {}]
  %s7 = inlined_call_operand.hbm [shape: f32[4,8,32], index: 7, kind: output, shape index: {}]
  %s8 = sld [smem:[#allocation0]]
  $region77: #{tpu_custom_call.1} parent=0
    _
  %s10 = ssub.s32 1, %s8
  %s11 = scalar_select 0, %s10, %s8
  %12 = sst [smem:[#allocation2]] %s6
  $region1: #{tpu_custom_call.1} parent=0
    #allocation3 [shape = 'u8[16384]{0}', space=vmem, size = 0x4000, scoped, tag = 'input window, operand 0']
    #allocation4 [shape = 's32[2]{0}', space=sflag, size = 0x8, scoped, tag = 'scoped memory for tpu_custom_call.1']
    #allocation5 [shape = 's32[2]{0}', space=sflag, size = 0x8, scoped, tag = 'scoped memory for tpu_custom_call.1']
    #allocation6 [shape = 'u8[16384]{0}', space=vmem, size = 0x4000, scoped, tag = 'input window, operand 1']
    #allocation7 [shape = 's32[2]{0}', space=sflag, size = 0x8, scoped, tag = 'scoped memory for tpu_custom_call.1']
    #allocation8 [shape = 'u8[8192]{0}', space=vmem, size = 0x2000, scoped, tag = 'input window, operand 2, single buffered']
    #allocation9 [shape = 'u8[16384]{0}', space=vmem, size = 0x4000, scoped, tag = 'input window, operand 5, single buffered']
    #allocation10 [shape = 's32[1]{0}', space=sflag, size = 0x4, scoped, tag = 'scoped memory for tpu_custom_call.1']
    #allocation11 [shape = 'u8[16384]{0}', space=vmem, size = 0x4000, scoped, tag = 'output window, operand 0']
    %13 = vsyncpa [#allocation4], 0
    %s14 = scalar_lea.sflag [#allocation4], 1
    %15 = vsyncpa %s14, 0
    %16 = vsyncpa [#allocation7], 0
    %s17 = scalar_lea.sflag [#allocation7], 1
    %18 = vsyncpa %s17, 0
    %19 = vsyncpa [#allocation10], 0
    %20 = vsyncpa [#allocation5], 0
    %s21 = scalar_lea.sflag [#allocation5], 1
    %22 = vsyncpa %s21, 0
    loop: start=0, step=1, limit=4
    $region2: #{tpu_custom_call.1} parent=1 // loop_pre_header
      _
    $region3: #{tpu_custom_call.1} parent=1 // loop_header
      %s24 = sphi 0, %s28
      %p25 = scmp.ge.s32.totalorder %s24, 4
      %s34 = sphi 0, %s36
      %s37 = sphi 0, %s34
      %s38 = sphi 0, %s37
      %s54 = sphi 0, %s38
      %s60 = sphi 0, %s62
      %s63 = sphi 0, %s60
      %s64 = sphi 0, %s63
      %s80 = sphi 0, %s64
      %s84 = sphi 0, %s84
      %s86 = sphi 0, %s84
      %s87 = sphi 0, %s86
      %s101 = sphi 0, %s87
      %s105 = sphi 0, %s105
      %s107 = sphi 0, %s105
      %s108 = sphi 0, %s107
      %s122 = sphi 0, %s108
      %s126 = sphi 0, %s126
      %s128 = sphi 0, %s126
      %s129 = sphi 0, %s128
      %s143 = sphi 0, %s129
      %s147 = sphi 0, %s147
      %s149 = sphi 0, %s147
      %s150 = sphi 0, %s149
      %s164 = sphi 0, %s150
      %s168 = sphi 0, %s168
      %s170 = sphi 0, %s168
      %s171 = sphi 0, %s170
      %s185 = sphi 0, %s171
      %s191 = sphi 0, %s193
      %s194 = sphi 0, %s191
      %s195 = sphi 0, %s194
      %s211 = sphi 0, %s195
    $region4: #{tpu_custom_call.1} parent=1 // loop_header_branch
      %27 = sbr.rel (%p25) target = $region8
    $region5: #{tpu_custom_call.1} parent=1 // loop_body
      %s29 = ssub.s32 %s24, 1
      %s30 = ssub.s32 %s24, 2
      %s31 = sadd.s32 %s24, 1
      %s32 = ssub.s32 %s24, %s31
      %p33 = scmp.eq.s32.totalorder %s32, 0
      %s35 = sadd.s32 %s34, 1
      %s36 = scalar_select %p33, %s34, %s35
      %p39 = pneg %p33
      %p40 = scmp.eq.s32.totalorder %s24, 1
      %p41 = por %p39, %p40
      %p42 = scmp.ne.s32.totalorder %s34, %s37
      %p43 = scmp.eq.s32.totalorder %s24, 0
      %p44 = por %p42, %p43
      %p45 = scmp.ne.s32.totalorder %s34, %s37
      %p46 = scmp.eq.s32.totalorder %s29, 1
      %p47 = por %p45, %p46
      %p48 = scmp.ne.s32.totalorder %s37, %s38
      %p49 = scmp.eq.s32.totalorder %s29, 0
      %p50 = por %p48, %p49
      %p51 = scmp.ne.s32.totalorder %s37, %s38
      %p52 = scmp.eq.s32.totalorder %s30, 1
      %p53 = por %p51, %p52
      %p55 = scmp.ne.s32.totalorder %s38, %s54
      %p56 = scmp.eq.s32.totalorder %s30, 0
      %p57 = por %p55, %p56
      %s58 = ssub.s32 %s24, %s31
      %p59 = scmp.eq.s32.totalorder %s58, 0
      %s61 = sadd.s32 %s60, 1
      %s62 = scalar_select %p59, %s60, %s61
      %p65 = pneg %p59
      %p66 = scmp.eq.s32.totalorder %s24, 1
      %p67 = por %p65, %p66
      %p68 = scmp.ne.s32.totalorder %s60, %s63
      %p69 = scmp.eq.s32.totalorder %s24, 0
      %p70 = por %p68, %p69
      %p71 = scmp.ne.s32.totalorder %s60, %s63
      %p72 = scmp.eq.s32.totalorder %s29, 1
      %p73 = por %p71, %p72
      %p74 = scmp.ne.s32.totalorder %s63, %s64
      %p75 = scmp.eq.s32.totalorder %s29, 0
      %p76 = por %p74, %p75
      %p77 = scmp.ne.s32.totalorder %s63, %s64
      %p78 = scmp.eq.s32.totalorder %s30, 1
      %p79 = por %p77, %p78
      %p81 = scmp.ne.s32.totalorder %s64, %s80
      %p82 = scmp.eq.s32.totalorder %s30, 0
      %p83 = por %p81, %p82
      %s85 = sadd.s32 %s84, 1
      %p88 = scmp.eq.s32.totalorder %s24, 1
      %p89 = scmp.ne.s32.totalorder %s84, %s86
      %p90 = scmp.eq.s32.totalorder %s24, 0
      %p91 = por %p89, %p90
      %p92 = scmp.ne.s32.totalorder %s84, %s86
      %p93 = scmp.eq.s32.totalorder %s29, 1
      %p94 = por %p92, %p93
      %p95 = scmp.ne.s32.totalorder %s86, %s87
      %p96 = scmp.eq.s32.totalorder %s29, 0
      %p97 = por %p95, %p96
      %p98 = scmp.ne.s32.totalorder %s86, %s87
      %p99 = scmp.eq.s32.totalorder %s30, 1
      %p100 = por %p98, %p99
      %p102 = scmp.ne.s32.totalorder %s87, %s101
      %p103 = scmp.eq.s32.totalorder %s30, 0
      %p104 = por %p102, %p103
      %s106 = sadd.s32 %s105, 1
      %p109 = scmp.eq.s32.totalorder %s24, 1
      %p110 = scmp.ne.s32.totalorder %s105, %s107
      %p111 = scmp.eq.s32.totalorder %s24, 0
      %p112 = por %p110, %p111
      %p113 = scmp.ne.s32.totalorder %s105, %s107
      %p114 = scmp.eq.s32.totalorder %s29, 1
      %p115 = por %p113, %p114
      %p116 = scmp.ne.s32.totalorder %s107, %s108
      %p117 = scmp.eq.s32.totalorder %s29, 0
      %p118 = por %p116, %p117
      %p119 = scmp.ne.s32.totalorder %s107, %s108
      %p120 = scmp.eq.s32.totalorder %s30, 1
      %p121 = por %p119, %p120
      %p123 = scmp.ne.s32.totalorder %s108, %s122
      %p124 = scmp.eq.s32.totalorder %s30, 0
      %p125 = por %p123, %p124
      %s127 = sadd.s32 %s126, 1
      %p130 = scmp.eq.s32.totalorder %s24, 1
      %p131 = scmp.ne.s32.totalorder %s126, %s128
      %p132 = scmp.eq.s32.totalorder %s24, 0
      %p133 = por %p131, %p132
      %p134 = scmp.ne.s32.totalorder %s126, %s128
      %p135 = scmp.eq.s32.totalorder %s29, 1
      %p136 = por %p134, %p135
      %p137 = scmp.ne.s32.totalorder %s128, %s129
      %p138 = scmp.eq.s32.totalorder %s29, 0
      %p139 = por %p137, %p138
      %p140 = scmp.ne.s32.totalorder %s128, %s129
      %p141 = scmp.eq.s32.totalorder %s30, 1
      %p142 = por %p140, %p141
      %p144 = scmp.ne.s32.totalorder %s129, %s143
      %p145 = scmp.eq.s32.totalorder %s30, 0
      %p146 = por %p144, %p145
      %s148 = sadd.s32 %s147, 1
      %p151 = scmp.eq.s32.totalorder %s24, 1
      %p152 = scmp.ne.s32.totalorder %s147, %s149
      %p153 = scmp.eq.s32.totalorder %s24, 0
      %p154 = por %p152, %p153
      %p155 = scmp.ne.s32.totalorder %s147, %s149
      %p156 = scmp.eq.s32.totalorder %s29, 1
      %p157 = por %p155, %p156
      %p158 = scmp.ne.s32.totalorder %s149, %s150
      %p159 = scmp.eq.s32.totalorder %s29, 0
      %p160 = por %p158, %p159
      %p161 = scmp.ne.s32.totalorder %s149, %s150
      %p162 = scmp.eq.s32.totalorder %s30, 1
      %p163 = por %p161, %p162
      %p165 = scmp.ne.s32.totalorder %s150, %s164
      %p166 = scmp.eq.s32.totalorder %s30, 0
      %p167 = por %p165, %p166
      %s169 = sadd.s32 %s168, 1
      %p172 = scmp.eq.s32.totalorder %s24, 1
      %p173 = scmp.ne.s32.totalorder %s168, %s170
      %p174 = scmp.eq.s32.totalorder %s24, 0
      %p175 = por %p173, %p174
      %p176 = scmp.ne.s32.totalorder %s168, %s170
      %p177 = scmp.eq.s32.totalorder %s29, 1
      %p178 = por %p176, %p177
      %p179 = scmp.ne.s32.totalorder %s170, %s171
      %p180 = scmp.eq.s32.totalorder %s29, 0
      %p181 = por %p179, %p180
      %p182 = scmp.ne.s32.totalorder %s170, %s171
      %p183 = scmp.eq.s32.totalorder %s30, 1
      %p184 = por %p182, %p183
      %p186 = scmp.ne.s32.totalorder %s171, %s185
      %p187 = scmp.eq.s32.totalorder %s30, 0
      %p188 = por %p186, %p187
      %s189 = ssub.s32 %s24, %s31
      %p190 = scmp.eq.s32.totalorder %s189, 0
      %s192 = sadd.s32 %s191, 1
      %s193 = scalar_select %p190, %s191, %s192
      %p196 = pneg %p190
      %p197 = scmp.eq.s32.totalorder %s24, 1
      %p198 = por %p196, %p197
      %p199 = scmp.ne.s32.totalorder %s191, %s194
      %p200 = scmp.eq.s32.totalorder %s24, 0
      %p201 = por %p199, %p200
      %p202 = scmp.ne.s32.totalorder %s191, %s194
      %p203 = scmp.eq.s32.totalorder %s29, 1
      %p204 = por %p202, %p203
      %p205 = scmp.ne.s32.totalorder %s194, %s195
      %p206 = scmp.eq.s32.totalorder %s29, 0
      %p207 = por %p205, %p206
      %p208 = scmp.ne.s32.totalorder %s194, %s195
      %p209 = scmp.eq.s32.totalorder %s30, 1
      %p210 = por %p208, %p209
      %p212 = scmp.ne.s32.totalorder %s195, %s211
      %p213 = scmp.eq.s32.totalorder %s30, 0
      %p214 = por %p212, %p213
      %p215 = scmp.le.s32.totalorder 1, %s24
      %p216 = scmp.lt.s32.totalorder %s24, 3
      %p217 = pnand %p215, %p216
      %p218 = pneg %p217
      // Predicated region
      $region9: #{tpu_custom_call.1} parent=5 // pred_check
        _
      $region10: #{tpu_custom_call.1} parent=5 // pred_check_branch
        %220 = sbr.rel (%p217) target = $region12
      $region11: #{tpu_custom_call.1} parent=5 // pred_region
        %s221 = ssub.s32 %s24, 1
        // Predicated region
        $region13: #{tpu_custom_call.1} parent=11 // pred_check
          %p222 = pneg %p97
        $region14: #{tpu_custom_call.1} parent=11 // pred_check_branch
          %224 = sbr.rel (%p222) target = $region16
        $region15: #{tpu_custom_call.1} parent=11 // pred_region
          %s226 = ssub.s32 256, 256
          %227 = vsyncadd [#allocation7], %s226
          %s228 = sshll.u32 [#allocation8], 4
          %s229 = int_to_ptr.vmem [resolvable:$true] %s228
          %234 = dma.hbm_to_vmem [thread:$0]  %s2, 256, %s229, [#allocation7], 128, 128, 8
        $region16: #{tpu_custom_call.1} parent=11 // pred_fallthru
          _
        // Predicated region
        $region17: #{tpu_custom_call.1} parent=11 // pred_check
          %p235 = pneg %p118
        $region18: #{tpu_custom_call.1} parent=11 // pred_check_branch
          %237 = sbr.rel (%p235) target = $region20
        $region19: #{tpu_custom_call.1} parent=11 // pred_region
          _
        $region20: #{tpu_custom_call.1} parent=11 // pred_fallthru
          _
        // Predicated region
        $region21: #{tpu_custom_call.1} parent=11 // pred_check
          %p238 = pneg %p139
        $region22: #{tpu_custom_call.1} parent=11 // pred_check_branch
          %240 = sbr.rel (%p238) target = $region24
        $region23: #{tpu_custom_call.1} parent=11 // pred_region
          _
        $region24: #{tpu_custom_call.1} parent=11 // pred_fallthru
          _
        // Predicated region
        $region25: #{tpu_custom_call.1} parent=11 // pred_check
          %p241 = pneg %p160
        $region26: #{tpu_custom_call.1} parent=11 // pred_check_branch
          %243 = sbr.rel (%p241) target = $region28
        $region27: #{tpu_custom_call.1} parent=11 // pred_region
          %s245 = ssub.s32 512, 512
          %246 = vsyncadd [#allocation10], %s245
          %s247 = sshll.u32 [#allocation9], 4
          %s248 = int_to_ptr.vmem [resolvable:$true] %s247
          %253 = dma.hbm_to_vmem [thread:$0]  %s5, 512, %s248, [#allocation10], 128, 128, 8
        $region28: #{tpu_custom_call.1} parent=11 // pred_fallthru
          _
        // Predicated region
        $region29: #{tpu_custom_call.1} parent=11 // pred_check
          %p254 = pneg %p181
        $region30: #{tpu_custom_call.1} parent=11 // pred_check_branch
          %256 = sbr.rel (%p254) target = $region32
        $region31: #{tpu_custom_call.1} parent=11 // pred_region
          _
        $region32: #{tpu_custom_call.1} parent=11 // pred_fallthru
          _
      $region12: #{tpu_custom_call.1} parent=5 // pred_fallthru
        _
      %p257 = scmp.lt.s32.totalorder %s24, 2
      // Predicated region
      $region33: #{tpu_custom_call.1} parent=5 // pred_check
        %p258 = pneg %p257
      $region34: #{tpu_custom_call.1} parent=5 // pred_check_branch
        %260 = sbr.rel (%p258) target = $region36
      $region35: #{tpu_custom_call.1} parent=5 // pred_region
        // Predicated region
        $region37: #{tpu_custom_call.1} parent=35 // pred_check
          %p261 = pneg %p44
        $region38: #{tpu_custom_call.1} parent=35 // pred_check_branch
          %263 = sbr.rel (%p261) target = $region40
        $region39: #{tpu_custom_call.1} parent=35 // pred_region
          %s264 = sand.u32 %s34, 1
          %s265 = scalar_lea.sflag [#allocation4], %s264
          %s266 = sand.u32 %s34, 1
          %s267 = smul.addr %s266, 16
          %s268 = scalar_lea.vmem [#allocation3], %s267
          %s269 = smul.u32 2, %s24
          %s271 = ssub.s32 256, 256
          %272 = vsyncadd %s265, %s271
          %s273 = smul.addr %s269, 128
          %s274 = scalar_lea.hbm %s0, %s273
          %s275 = sshll.u32 %s268, 4
          %s276 = int_to_ptr.vmem [resolvable:$true] %s275
          %281 = dma.hbm_to_vmem [thread:$0]  %s274, 256, %s276, %s265, 128, 128, 8
        $region40: #{tpu_custom_call.1} parent=35 // pred_fallthru
          _
        // Predicated region
        $region41: #{tpu_custom_call.1} parent=35 // pred_check
          %p282 = pneg %p70
        $region42: #{tpu_custom_call.1} parent=35 // pred_check_branch
          %284 = sbr.rel (%p282) target = $region44
        $region43: #{tpu_custom_call.1} parent=35 // pred_region
          %s285 = sand.u32 %s24, 1
          %s286 = scalar_lea.sflag [#allocation7], %s285
          %s287 = sand.u32 %s60, 1
          %s288 = smul.addr %s287, 16
          %s289 = scalar_lea.vmem [#allocation6], %s288
          %s290 = smul.u32 2, %s24
          %s292 = ssub.s32 256, 256
          %293 = vsyncadd %s286, %s292
          %s294 = smul.addr %s290, 128
          %s295 = scalar_lea.hbm %s1, %s294
          %s296 = sshll.u32 %s289, 4
          %s297 = int_to_ptr.vmem [resolvable:$true] %s296
          %302 = dma.hbm_to_vmem [thread:$0]  %s295, 256, %s297, %s286, 128, 128, 8
        $region44: #{tpu_custom_call.1} parent=35 // pred_fallthru
          _
      $region36: #{tpu_custom_call.1} parent=5 // pred_fallthru
        _
      %p303 = scmp.le.s32.totalorder 1, %s24
      %p304 = scmp.lt.s32.totalorder %s24, 3
      %p305 = pnand %p303, %p304
      %p306 = pneg %p305
      // Predicated region
      $region45: #{tpu_custom_call.1} parent=5 // pred_check
        _
      $region46: #{tpu_custom_call.1} parent=5 // pred_check_branch
        %308 = sbr.rel (%p305) target = $region48
      $region47: #{tpu_custom_call.1} parent=5 // pred_region
        %s309 = ssub.s32 %s24, 1
        %s310 = sand.u32 %s37, 1
        %s311 = scalar_lea.sflag [#allocation4], %s310
        %s312 = sand.u32 %s37, 1
        %s313 = smul.addr %s312, 16
        %s314 = scalar_lea.vmem [#allocation3], %s313
        // Predicated region
        $region49: #{tpu_custom_call.1} parent=47 // pred_check
          %p315 = pneg %p50
        $region50: #{tpu_custom_call.1} parent=47 // pred_check_branch
          %317 = sbr.rel (%p315) target = $region52
        $region51: #{tpu_custom_call.1} parent=47 // pred_region
          %318 = dma.done %s311, 256
        $region52: #{tpu_custom_call.1} parent=47 // pred_fallthru
          _
        %s319 = sand.u32 %s29, 1
        %s320 = scalar_lea.sflag [#allocation7], %s319
        %s321 = sand.u32 %s63, 1
        %s322 = smul.addr %s321, 16
        %s323 = scalar_lea.vmem [#allocation6], %s322
        // Predicated region
        $region53: #{tpu_custom_call.1} parent=47 // pred_check
          %p324 = pneg %p76
        $region54: #{tpu_custom_call.1} parent=47 // pred_check_branch
          %326 = sbr.rel (%p324) target = $region56
        $region55: #{tpu_custom_call.1} parent=47 // pred_region
          %327 = dma.done %s320, 256
        $region56: #{tpu_custom_call.1} parent=47 // pred_fallthru
          _
        // Predicated region
        $region57: #{tpu_custom_call.1} parent=47 // pred_check
          %p328 = pneg %p97
        $region58: #{tpu_custom_call.1} parent=47 // pred_check_branch
          %330 = sbr.rel (%p328) target = $region60
        $region59: #{tpu_custom_call.1} parent=47 // pred_region
          %331 = dma.done [#allocation7], 256
        $region60: #{tpu_custom_call.1} parent=47 // pred_fallthru
          _
        // Predicated region
        $region61: #{tpu_custom_call.1} parent=47 // pred_check
          %p332 = pneg %p160
        $region62: #{tpu_custom_call.1} parent=47 // pred_check_branch
          %334 = sbr.rel (%p332) target = $region64
        $region63: #{tpu_custom_call.1} parent=47 // pred_region
          %335 = dma.done [#allocation10], 512
        $region64: #{tpu_custom_call.1} parent=47 // pred_fallthru
          _
        %s336 = sand.u32 %s37, 1
        %s337 = scalar_lea.sflag [#allocation4], %s336
        %s338 = sand.u32 %s37, 1
        %s339 = smul.addr %s338, 16
        %s340 = scalar_lea.vmem [#allocation3], %s339
        %p341 = pneg %p50
        %p342 = pneg %p47
        %s343 = sand.u32 %s29, 1
        %s344 = scalar_lea.sflag [#allocation7], %s343
        %s345 = sand.u32 %s63, 1
        %s346 = smul.addr %s345, 16
        %s347 = scalar_lea.vmem [#allocation6], %s346
        %p348 = pneg %p76
        %p349 = pneg %p73
        %p350 = pneg %p97
        %p351 = pneg %p94
        %p352 = pneg %p118
        %p353 = pneg %p115
        %p354 = pneg %p139
        %p355 = pneg %p136
        %p356 = pneg %p160
        %p357 = pneg %p157
        %p358 = pneg %p181
        %p359 = pneg %p178
        %p360 = pneg %p207
        %p361 = pneg %p204
        %s362 = sand.u32 %s194, 1
        %s363 = scalar_lea.sflag [#allocation5], %s362
        %s364 = sand.u32 %s194, 1
        %s365 = smul.addr %s364, 16
        %s366 = scalar_lea.vmem [#allocation11], %s365
        %s367 = smul.u32 2, %s29
        %s368 = smul.u32 2, %s29
        %s369 = smul.u32 2, %s29
        %s370 = sld [smem:[#allocation2]]
        %v371 = vld [vmem:[%s314] sm:$0xff]
        %v372 = vld [vmem:[%s314 + $0x8] sm:$0xff]
        %v373 = vld [vmem:[#allocation8] sm:$0xff]
        %v374 = vld [vmem:[#allocation8 + $0x8] sm:$0xff]
        %vm375 = vcmask 130048
        %v377 = vsel %vm375, %v371, 0
        %v380 = vsel %vm375, %v372, 0
        %382 = vmatprep.subr.mxu0 0.0
        %383 = vmatpush1.msra.mxu0 0.0
        %384 = vmatprep.subr.mxu0 0.0
        %385 = vmatpush1.msra.mxu0 0.0
        %386 = vmatprep.subr.mxu0 0.0
        %387 = vmatpush1.msra.mxu0 0.0
        %388 = vmatprep.subr.mxu0 0.0
        %389 = vmatpush1.msra.mxu0 0.0
        %390 = vmatprep.subr.mxu0 0.0
        %391 = vmatpush1.msra.mxu0 0.0
        %392 = vmatprep.subr.mxu0 0.0
        %393 = vmatpush1.msra.mxu0 0.0
        %394 = vmatprep.subr.mxu0 0.0
        %395 = vmatpush1.msra.mxu0 0.0
        %396 = vmatprep.subr.mxu0 0.0
        %397 = vmatpush1.msra.mxu0 0.0
        %398 = vmatprep.subr.mxu0 0.0
        %399 = vmatpush1.msra.mxu0 0.0
        %400 = vmatprep.subr.mxu0 0.0
        %401 = vmatpush1.msra.mxu0 0.0
        %402 = vmatprep.subr.mxu0 0.0
        %403 = vmatpush1.msra.mxu0 0.0
        %404 = vmatprep.subr.mxu0 0.0
        %405 = vmatpush1.msra.mxu0 0.0
        %406 = vmatprep.subr.mxu0 0.0
        %407 = vmatpush1.msra.mxu0 0.0
        %408 = vmatprep.subr.mxu0 0.0
        %409 = vmatpush1.msra.mxu0 0.0
        %410 = vmatprep.subr.mxu0 0.0
        %411 = vmatpush1.msra.mxu0 %v374
        %412 = vmatprep.subr.mxu0 0.0
        %413 = vmatpush1.msra.mxu0 %v373
        %414 = vmatprep.subr.mxu0 0.0
        %415 = vmatpush2.msra.mxu0 0.0
        %416 = vmatprep.subr.mxu0 0.0
        %417 = vmatpush2.msra.mxu0 0.0
        %418 = vmatprep.subr.mxu0 0.0
        %419 = vmatpush2.msra.mxu0 0.0
        %420 = vmatprep.subr.mxu0 0.0
        %421 = vmatpush2.msra.mxu0 0.0
        %422 = vmatprep.subr.mxu0 0.0
        %423 = vmatpush2.msra.mxu0 0.0
        %424 = vmatprep.subr.mxu0 0.0
        %425 = vmatpush2.msra.mxu0 0.0
        %426 = vmatprep.subr.mxu0 0.0
        %427 = vmatpush2.msra.mxu0 0.0
        %428 = vmatprep.subr.mxu0 0.0
        %429 = vmatpush2.msra.mxu0 0.0
        %430 = vmatprep.subr.mxu0 0.0
        %431 = vmatpush2.msra.mxu0 0.0
        %432 = vmatprep.subr.mxu0 0.0
        %433 = vmatpush2.msra.mxu0 0.0
        %434 = vmatprep.subr.mxu0 0.0
        %435 = vmatpush2.msra.mxu0 0.0
        %436 = vmatprep.subr.mxu0 0.0
        %437 = vmatpush2.msra.mxu0 0.0
        %438 = vmatprep.subr.mxu0 0.0
        %439 = vmatpush2.msra.mxu0 0.0
        %440 = vmatprep.subr.mxu0 0.0
        %441 = vmatpush2.msra.mxu0 0.0
        %442 = vmatprep.subr.mxu0 0.0
        %443 = vmatpush2.msra.mxu0 0.0
        %444 = vmatprep.subr.mxu0 0.0
        %445 = vmatpush2.msra.mxu0 0.0
        %446 = vmatprep.mubr.f32.mxu0 0.0
        %447 = vmatmul.mubr.f32.gmra.mxu0 %v377
        %v448 = vpop.f32.mrf.mxu0
        %v449 = vadd.f32 0.0, %v448
        %v450 = vpop.f32.mrf.mxu0
        %451 = vmatprep.mubr.f32.mxu0 0.0
        %452 = vmatmul.mubr.f32.gmra.mxu0 %v380
        %v453 = vpop.f32.mrf.mxu0
        %v454 = vadd.f32 0.0, %v453
        %v455 = vpop.f32.mrf.mxu0
        %456 = vdwg.mxu0
        %v457 = vld [vmem:[%s3] sm:$0x1]
        %v458 = vld [vmem:[%s4] sm:$0x1]
        %vm459 = vcmask 261120
        %v461 = vsel %vm459, %v457, 0
        %v464 = vsel %vm459, %v449, 0
        %466 = vmatprep.subr.mxu0 0.0
        %467 = vmatpush1.xpose.msra.mxu0 0.0
        %468 = vmatprep.subr.mxu0 0.0
        %469 = vmatpush1.xpose.msra.mxu0 0.0
        %470 = vmatprep.subr.mxu0 0.0
        %471 = vmatpush1.xpose.msra.mxu0 0.0
        %472 = vmatprep.subr.mxu0 0.0
        %473 = vmatpush1.xpose.msra.mxu0 0.0
        %474 = vmatprep.subr.mxu0 0.0
        %475 = vmatpush1.xpose.msra.mxu0 0.0
        %476 = vmatprep.subr.mxu0 0.0
        %477 = vmatpush1.xpose.msra.mxu0 0.0
        %478 = vmatprep.subr.mxu0 0.0
        %479 = vmatpush1.xpose.msra.mxu0 0.0
        %480 = vmatprep.subr.mxu0 0.0
        %481 = vmatpush1.xpose.msra.mxu0 0.0
        %482 = vmatprep.subr.mxu0 0.0
        %483 = vmatpush1.xpose.msra.mxu0 0.0
        %484 = vmatprep.subr.mxu0 0.0
        %485 = vmatpush1.xpose.msra.mxu0 0.0
        %486 = vmatprep.subr.mxu0 0.0
        %487 = vmatpush1.xpose.msra.mxu0 0.0
        %488 = vmatprep.subr.mxu0 0.0
        %489 = vmatpush1.xpose.msra.mxu0 0.0
        %490 = vmatprep.subr.mxu0 0.0
        %491 = vmatpush1.xpose.msra.mxu0 0.0
        %492 = vmatprep.subr.mxu0 0.0
        %493 = vmatpush1.xpose.msra.mxu0 0.0
        %494 = vmatprep.subr.mxu0 0.0
        %495 = vmatpush1.xpose.msra.mxu0 0.0
        %496 = vmatprep.subr.mxu0 0.0
        %497 = vmatpush1.xpose.msra.mxu0 %v464
        %498 = vmatprep.subr.mxu0 0.0
        %499 = vmatpush2.xpose.msra.mxu0 0.0
        %500 = vmatprep.subr.mxu0 0.0
        %501 = vmatpush2.xpose.msra.mxu0 0.0
        %502 = vmatprep.subr.mxu0 0.0
        %503 = vmatpush2.xpose.msra.mxu0 0.0
        %504 = vmatprep.subr.mxu0 0.0
        %505 = vmatpush2.xpose.msra.mxu0 0.0
        %506 = vmatprep.subr.mxu0 0.0
        %507 = vmatpush2.xpose.msra.mxu0 0.0
        %508 = vmatprep.subr.mxu0 0.0
        %509 = vmatpush2.xpose.msra.mxu0 0.0
        %510 = vmatprep.subr.mxu0 0.0
        %511 = vmatpush2.xpose.msra.mxu0 0.0
        %512 = vmatprep.subr.mxu0 0.0
        %513 = vmatpush2.xpose.msra.mxu0 0.0
        %514 = vmatprep.subr.mxu0 0.0
        %515 = vmatpush2.xpose.msra.mxu0 0.0
        %516 = vmatprep.subr.mxu0 0.0
        %517 = vmatpush2.xpose.msra.mxu0 0.0
        %518 = vmatprep.subr.mxu0 0.0
        %519 = vmatpush2.xpose.msra.mxu0 0.0
        %520 = vmatprep.subr.mxu0 0.0
        %521 = vmatpush2.xpose.msra.mxu0 0.0
        %522 = vmatprep.subr.mxu0 0.0
        %523 = vmatpush2.xpose.msra.mxu0 0.0
        %524 = vmatprep.subr.mxu0 0.0
        %525 = vmatpush2.xpose.msra.mxu0 0.0
        %526 = vmatprep.subr.mxu0 0.0
        %527 = vmatpush2.xpose.msra.mxu0 0.0
        %528 = vmatprep.subr.mxu0 0.0
        %529 = vmatpush2.xpose.msra.mxu0 0.0
        %530 = vmatprep.mubr.f32.mxu0 0.0
        %531 = vmatmul.mubr.f32.gmra.mxu0 %v461
        %v532 = vpop.f32.mrf.mxu0
        %v533 = vadd.f32 0.0, %v532
        %v534 = vpop.f32.mrf.mxu0
        %535 = vdwg.mxu0
        %v537 = vsel %vm459, %v454, 0
        %539 = vmatprep.subr.mxu0 0.0
        %540 = vmatpush1.xpose.msra.mxu0 0.0
        %541 = vmatprep.subr.mxu0 0.0
        %542 = vmatpush1.xpose.msra.mxu0 0.0
        %543 = vmatprep.subr.mxu0 0.0
        %544 = vmatpush1.xpose.msra.mxu0 0.0
        %545 = vmatprep.subr.mxu0 0.0
        %546 = vmatpush1.xpose.msra.mxu0 0.0
        %547 = vmatprep.subr.mxu0 0.0
        %548 = vmatpush1.xpose.msra.mxu0 0.0
        %549 = vmatprep.subr.mxu0 0.0
        %550 = vmatpush1.xpose.msra.mxu0 0.0
        %551 = vmatprep.subr.mxu0 0.0
        %552 = vmatpush1.xpose.msra.mxu0 0.0
        %553 = vmatprep.subr.mxu0 0.0
        %554 = vmatpush1.xpose.msra.mxu0 0.0
        %555 = vmatprep.subr.mxu0 0.0
        %556 = vmatpush1.xpose.msra.mxu0 0.0
        %557 = vmatprep.subr.mxu0 0.0
        %558 = vmatpush1.xpose.msra.mxu0 0.0
        %559 = vmatprep.subr.mxu0 0.0
        %560 = vmatpush1.xpose.msra.mxu0 0.0
        %561 = vmatprep.subr.mxu0 0.0
        %562 = vmatpush1.xpose.msra.mxu0 0.0
        %563 = vmatprep.subr.mxu0 0.0
        %564 = vmatpush1.xpose.msra.mxu0 0.0
        %565 = vmatprep.subr.mxu0 0.0
        %566 = vmatpush1.xpose.msra.mxu0 0.0
        %567 = vmatprep.subr.mxu0 0.0
        %568 = vmatpush1.xpose.msra.mxu0 0.0
        %569 = vmatprep.subr.mxu0 0.0
        %570 = vmatpush1.xpose.msra.mxu0 %v537
        %571 = vmatprep.subr.mxu0 0.0
        %572 = vmatpush2.xpose.msra.mxu0 0.0
        %573 = vmatprep.subr.mxu0 0.0
        %574 = vmatpush2.xpose.msra.mxu0 0.0
        %575 = vmatprep.subr.mxu0 0.0
        %576 = vmatpush2.xpose.msra.mxu0 0.0
        %577 = vmatprep.subr.mxu0 0.0
        %578 = vmatpush2.xpose.msra.mxu0 0.0
        %579 = vmatprep.subr.mxu0 0.0
        %580 = vmatpush2.xpose.msra.mxu0 0.0
        %581 = vmatprep.subr.mxu0 0.0
        %582 = vmatpush2.xpose.msra.mxu0 0.0
        %583 = vmatprep.subr.mxu0 0.0
        %584 = vmatpush2.xpose.msra.mxu0 0.0
        %585 = vmatprep.subr.mxu0 0.0
        %586 = vmatpush2.xpose.msra.mxu0 0.0
        %587 = vmatprep.subr.mxu0 0.0
        %588 = vmatpush2.xpose.msra.mxu0 0.0
        %589 = vmatprep.subr.mxu0 0.0
        %590 = vmatpush2.xpose.msra.mxu0 0.0
        %591 = vmatprep.subr.mxu0 0.0
        %592 = vmatpush2.xpose.msra.mxu0 0.0
        %593 = vmatprep.subr.mxu0 0.0
        %594 = vmatpush2.xpose.msra.mxu0 0.0
        %595 = vmatprep.subr.mxu0 0.0
        %596 = vmatpush2.xpose.msra.mxu0 0.0
        %597 = vmatprep.subr.mxu0 0.0
        %598 = vmatpush2.xpose.msra.mxu0 0.0
        %599 = vmatprep.subr.mxu0 0.0
        %600 = vmatpush2.xpose.msra.mxu0 0.0
        %601 = vmatprep.subr.mxu0 0.0
        %602 = vmatpush2.xpose.msra.mxu0 0.0
        %603 = vmatprep.mubr.f32.mxu0 0.0
        %604 = vmatmul.mubr.f32.gmra.mxu0 %v461
        %v605 = vpop.f32.mrf.mxu0
        %v606 = vadd.f32 0.0, %v605
        %v607 = vpop.f32.mrf.mxu0
        %608 = vdwg.mxu0
        %v610 = vlaneseq
        %v611 = vshrl.u32 %v610, 7
        %v612 = vsub.s32 0, %v611
        %v613 = vrot.slane %v458, %v612
        %v615 = vmul.f32 %v449, %v613
        %v616 = vsel %vm459, %v615, 0.0
        %617 = vadd.xlane.f32.xlu0 %v616
        %v618 = vpop.xlane.xlu0 %617
        %v619 = vmul.f32 %v454, %v613
        %v620 = vsel %vm459, %v619, 0.0
        %621 = vadd.xlane.f32.xlu0 %v620
        %v622 = vpop.xlane.xlu0 %621
        %v623 = vlaneseq
        %v624 = vshrl.u32 %v623, 7
        %v625 = vsub.s32 0, %v624
        %v626 = vrot.slane %v533, %v625
        %v627 = vlaneseq
        %v628 = vshrl.u32 %v627, 7
        %v629 = vsub.s32 0, %v628
        %v630 = vrot.slane %v606, %v629
        %632 = vset.pattern.permute.xlu0 0
        %633 = vperm.xlu0 %632, %v618
        %v634 = vpop.permute.xlu0 %633
        %637 = vset.pattern.permute.xlu0 0
        %638 = vperm.xlu0 %637, %v622
        %v639 = vpop.permute.xlu0 %638
        %v641 = vadd.f32 %v626, %v634
        %v642 = vadd.f32 %v630, %v639
        %v643 = vstv %s370
        %v644 = vadd.f32 %v641, %v643
        %v645 = vadd.f32 %v642, %v643
        %v646 = vtanh.pop %v644
        %v647 = vtanh.pop %v645
        %v648 = vld [vmem:[%s323] sm:$0xff]
        %v649 = vld [vmem:[%s323 + $0x8] sm:$0xff]
        %v650 = vlaneseq
        %v651 = vshrl.u32 %v650, 7
        %v652 = vlaneseq
        %v653 = vand.u32 %v652, 127
        %vm654 = vcmp.gt.f32.partialorder %v648, 0.0
        %vm655 = vcmp.gt.f32.partialorder %v649, 0.0
        %vm656 = vcmp.eq.s32.totalorder %v651, %v653
        %vm657 = vmor %vm654, %vm656
        %vm658 = vmor %vm655, %vm656
        %v659 = vmul.f32 %v646, 1.442695
        %v660 = vpow.pop %v659
        %v661 = vmul.f32 %v647, 1.442695
        %v662 = vpow.pop %v661
        %v663 = vsel %vm657, %v660, 0.0
        %v664 = vsel %vm658, %v662, 0.0
        %vm665 = vcmask 64512
        %v666 = vsel %vm665, %v663, 0.0
        %667 = vadd.xlane.f32.xlu0 %v666
        %v668 = vpop.xlane.xlu0 %667
        %v669 = vsel %vm665, %v664, 0.0
        %670 = vadd.xlane.f32.xlu0 %v669
        %v671 = vpop.xlane.xlu0 %670
        %v672 = vrcp.pop %v668
        %v673 = vrcp.pop %v671
        %v674 = vmul.f32 %v668, %v672
        %v675 = vmul.f32 %v671, %v673
        %v676 = vsub.f32 2.0, %v674
        %v677 = vsub.f32 2.0, %v675
        %v678 = vmul.f32 %v672, %v676
        %v679 = vmul.f32 %v673, %v677
        %v680 = vmul.f32 %v663, %v678
        %v681 = vmul.f32 %v664, %v679
        %v683 = vsel %vm665, %v680, 0
        %685 = vmatprep.subr.mxu0 0.0
        %686 = vmatpush1.msra.mxu0 0.0
        %687 = vmatprep.subr.mxu0 0.0
        %688 = vmatpush1.msra.mxu0 0.0
        %689 = vmatprep.subr.mxu0 0.0
        %690 = vmatpush1.msra.mxu0 0.0
        %691 = vmatprep.subr.mxu0 0.0
        %692 = vmatpush1.msra.mxu0 0.0
        %693 = vmatprep.subr.mxu0 0.0
        %694 = vmatpush1.msra.mxu0 0.0
        %695 = vmatprep.subr.mxu0 0.0
        %696 = vmatpush1.msra.mxu0 0.0
        %697 = vmatprep.subr.mxu0 0.0
        %698 = vmatpush1.msra.mxu0 0.0
        %699 = vmatprep.subr.mxu0 0.0
        %700 = vmatpush1.msra.mxu0 0.0
        %701 = vmatprep.subr.mxu0 0.0
        %702 = vmatpush1.msra.mxu0 0.0
        %703 = vmatprep.subr.mxu0 0.0
        %704 = vmatpush1.msra.mxu0 0.0
        %705 = vmatprep.subr.mxu0 0.0
        %706 = vmatpush1.msra.mxu0 0.0
        %707 = vmatprep.subr.mxu0 0.0
        %708 = vmatpush1.msra.mxu0 0.0
        %709 = vmatprep.subr.mxu0 0.0
        %710 = vmatpush1.msra.mxu0 0.0
        %711 = vmatprep.subr.mxu0 0.0
        %712 = vmatpush1.msra.mxu0 0.0
        %713 = vmatprep.subr.mxu0 0.0
        %714 = vmatpush1.msra.mxu0 0.0
        %715 = vmatprep.subr.mxu0 0.0
        %716 = vmatpush1.msra.mxu0 %v449
        %717 = vmatprep.subr.mxu0 0.0
        %718 = vmatpush2.msra.mxu0 0.0
        %719 = vmatprep.subr.mxu0 0.0
        %720 = vmatpush2.msra.mxu0 0.0
        %721 = vmatprep.subr.mxu0 0.0
        %722 = vmatpush2.msra.mxu0 0.0
        %723 = vmatprep.subr.mxu0 0.0
        %724 = vmatpush2.msra.mxu0 0.0
        %725 = vmatprep.subr.mxu0 0.0
        %726 = vmatpush2.msra.mxu0 0.0
        %727 = vmatprep.subr.mxu0 0.0
        %728 = vmatpush2.msra.mxu0 0.0
        %729 = vmatprep.subr.mxu0 0.0
        %730 = vmatpush2.msra.mxu0 0.0
        %731 = vmatprep.subr.mxu0 0.0
        %732 = vmatpush2.msra.mxu0 0.0
        %733 = vmatprep.subr.mxu0 0.0
        %734 = vmatpush2.msra.mxu0 0.0
        %735 = vmatprep.subr.mxu0 0.0
        %736 = vmatpush2.msra.mxu0 0.0
        %737 = vmatprep.subr.mxu0 0.0
        %738 = vmatpush2.msra.mxu0 0.0
        %739 = vmatprep.subr.mxu0 0.0
        %740 = vmatpush2.msra.mxu0 0.0
        %741 = vmatprep.subr.mxu0 0.0
        %742 = vmatpush2.msra.mxu0 0.0
        %743 = vmatprep.subr.mxu0 0.0
        %744 = vmatpush2.msra.mxu0 0.0
        %745 = vmatprep.subr.mxu0 0.0
        %746 = vmatpush2.msra.mxu0 0.0
        %747 = vmatprep.subr.mxu0 0.0
        %748 = vmatpush2.msra.mxu0 0.0
        %749 = vmatprep.mubr.f32.mxu0 0.0
        %750 = vmatmul.mubr.f32.gmra.mxu0 %v683
        %v751 = vpop.f32.mrf.mxu0
        %v752 = vadd.f32 0.0, %v751
        %v753 = vpop.f32.mrf.mxu0
        %754 = vdwg.mxu0
        %v756 = vsel %vm665, %v681, 0
        %758 = vmatprep.subr.mxu0 0.0
        %759 = vmatpush1.msra.mxu0 0.0
        %760 = vmatprep.subr.mxu0 0.0
        %761 = vmatpush1.msra.mxu0 0.0
        %762 = vmatprep.subr.mxu0 0.0
        %763 = vmatpush1.msra.mxu0 0.0
        %764 = vmatprep.subr.mxu0 0.0
        %765 = vmatpush1.msra.mxu0 0.0
        %766 = vmatprep.subr.mxu0 0.0
        %767 = vmatpush1.msra.mxu0 0.0
        %768 = vmatprep.subr.mxu0 0.0
        %769 = vmatpush1.msra.mxu0 0.0
        %770 = vmatprep.subr.mxu0 0.0
        %771 = vmatpush1.msra.mxu0 0.0
        %772 = vmatprep.subr.mxu0 0.0
        %773 = vmatpush1.msra.mxu0 0.0
        %774 = vmatprep.subr.mxu0 0.0
        %775 = vmatpush1.msra.mxu0 0.0
        %776 = vmatprep.subr.mxu0 0.0
        %777 = vmatpush1.msra.mxu0 0.0
        %778 = vmatprep.subr.mxu0 0.0
        %779 = vmatpush1.msra.mxu0 0.0
        %780 = vmatprep.subr.mxu0 0.0
        %781 = vmatpush1.msra.mxu0 0.0
        %782 = vmatprep.subr.mxu0 0.0
        %783 = vmatpush1.msra.mxu0 0.0
        %784 = vmatprep.subr.mxu0 0.0
        %785 = vmatpush1.msra.mxu0 0.0
        %786 = vmatprep.subr.mxu0 0.0
        %787 = vmatpush1.msra.mxu0 0.0
        %788 = vmatprep.subr.mxu0 0.0
        %789 = vmatpush1.msra.mxu0 %v454
        %790 = vmatprep.subr.mxu0 0.0
        %791 = vmatpush2.msra.mxu0 0.0
        %792 = vmatprep.subr.mxu0 0.0
        %793 = vmatpush2.msra.mxu0 0.0
        %794 = vmatprep.subr.mxu0 0.0
        %795 = vmatpush2.msra.mxu0 0.0
        %796 = vmatprep.subr.mxu0 0.0
        %797 = vmatpush2.msra.mxu0 0.0
        %798 = vmatprep.subr.mxu0 0.0
        %799 = vmatpush2.msra.mxu0 0.0
        %800 = vmatprep.subr.mxu0 0.0
        %801 = vmatpush2.msra.mxu0 0.0
        %802 = vmatprep.subr.mxu0 0.0
        %803 = vmatpush2.msra.mxu0 0.0
        %804 = vmatprep.subr.mxu0 0.0
        %805 = vmatpush2.msra.mxu0 0.0
        %806 = vmatprep.subr.mxu0 0.0
        %807 = vmatpush2.msra.mxu0 0.0
        %808 = vmatprep.subr.mxu0 0.0
        %809 = vmatpush2.msra.mxu0 0.0
        %810 = vmatprep.subr.mxu0 0.0
        %811 = vmatpush2.msra.mxu0 0.0
        %812 = vmatprep.subr.mxu0 0.0
        %813 = vmatpush2.msra.mxu0 0.0
        %814 = vmatprep.subr.mxu0 0.0
        %815 = vmatpush2.msra.mxu0 0.0
        %816 = vmatprep.subr.mxu0 0.0
        %817 = vmatpush2.msra.mxu0 0.0
        %818 = vmatprep.subr.mxu0 0.0
        %819 = vmatpush2.msra.mxu0 0.0
        %820 = vmatprep.subr.mxu0 0.0
        %821 = vmatpush2.msra.mxu0 0.0
        %822 = vmatprep.mubr.f32.mxu0 0.0
        %823 = vmatmul.mubr.f32.gmra.mxu0 %v756
        %v824 = vpop.f32.mrf.mxu0
        %v825 = vadd.f32 0.0, %v824
        %v826 = vpop.f32.mrf.mxu0
        %827 = vdwg.mxu0
        %v828 = vtanh.pop %v752
        %v829 = vtanh.pop %v825
        %v831 = vsel %vm665, %v648, 0
        %833 = vmatprep.subr.mxu0 0.0
        %834 = vmatpush1.msra.mxu0 0.0
        %835 = vmatprep.subr.mxu0 0.0
        %836 = vmatpush1.msra.mxu0 0.0
        %837 = vmatprep.subr.mxu0 0.0
        %838 = vmatpush1.msra.mxu0 0.0
        %839 = vmatprep.subr.mxu0 0.0
        %840 = vmatpush1.msra.mxu0 0.0
        %841 = vmatprep.subr.mxu0 0.0
        %842 = vmatpush1.msra.mxu0 0.0
        %843 = vmatprep.subr.mxu0 0.0
        %844 = vmatpush1.msra.mxu0 0.0
        %845 = vmatprep.subr.mxu0 0.0
        %846 = vmatpush1.msra.mxu0 0.0
        %847 = vmatprep.subr.mxu0 0.0
        %848 = vmatpush1.msra.mxu0 0.0
        %849 = vmatprep.subr.mxu0 0.0
        %850 = vmatpush1.msra.mxu0 0.0
        %851 = vmatprep.subr.mxu0 0.0
        %852 = vmatpush1.msra.mxu0 0.0
        %853 = vmatprep.subr.mxu0 0.0
        %854 = vmatpush1.msra.mxu0 0.0
        %855 = vmatprep.subr.mxu0 0.0
        %856 = vmatpush1.msra.mxu0 0.0
        %857 = vmatprep.subr.mxu0 0.0
        %858 = vmatpush1.msra.mxu0 0.0
        %859 = vmatprep.subr.mxu0 0.0
        %860 = vmatpush1.msra.mxu0 0.0
        %861 = vmatprep.subr.mxu0 0.0
        %862 = vmatpush1.msra.mxu0 0.0
        %863 = vmatprep.subr.mxu0 0.0
        %864 = vmatpush1.msra.mxu0 %v828
        %865 = vmatprep.subr.mxu0 0.0
        %866 = vmatpush2.msra.mxu0 0.0
        %867 = vmatprep.subr.mxu0 0.0
        %868 = vmatpush2.msra.mxu0 0.0
        %869 = vmatprep.subr.mxu0 0.0
        %870 = vmatpush2.msra.mxu0 0.0
        %871 = vmatprep.subr.mxu0 0.0
        %872 = vmatpush2.msra.mxu0 0.0
        %873 = vmatprep.subr.mxu0 0.0
        %874 = vmatpush2.msra.mxu0 0.0
        %875 = vmatprep.subr.mxu0 0.0
        %876 = vmatpush2.msra.mxu0 0.0
        %877 = vmatprep.subr.mxu0 0.0
        %878 = vmatpush2.msra.mxu0 0.0
        %879 = vmatprep.subr.mxu0 0.0
        %880 = vmatpush2.msra.mxu0 0.0
        %881 = vmatprep.subr.mxu0 0.0
        %882 = vmatpush2.msra.mxu0 0.0
        %883 = vmatprep.subr.mxu0 0.0
        %884 = vmatpush2.msra.mxu0 0.0
        %885 = vmatprep.subr.mxu0 0.0
        %886 = vmatpush2.msra.mxu0 0.0
        %887 = vmatprep.subr.mxu0 0.0
        %888 = vmatpush2.msra.mxu0 0.0
        %889 = vmatprep.subr.mxu0 0.0
        %890 = vmatpush2.msra.mxu0 0.0
        %891 = vmatprep.subr.mxu0 0.0
        %892 = vmatpush2.msra.mxu0 0.0
        %893 = vmatprep.subr.mxu0 0.0
        %894 = vmatpush2.msra.mxu0 0.0
        %895 = vmatprep.subr.mxu0 0.0
        %896 = vmatpush2.msra.mxu0 0.0
        %897 = vmatprep.mubr.f32.mxu0 0.0
        %898 = vmatmul.mubr.f32.gmra.mxu0 %v831
        %v899 = vpop.f32.mrf.mxu0
        %v900 = vadd.f32 %v828, %v899
        %v901 = vpop.f32.mrf.mxu0
        %902 = vdwg.mxu0
        %v904 = vsel %vm665, %v649, 0
        %906 = vmatprep.subr.mxu0 0.0
        %907 = vmatpush1.msra.mxu0 0.0
        %908 = vmatprep.subr.mxu0 0.0
        %909 = vmatpush1.msra.mxu0 0.0
        %910 = vmatprep.subr.mxu0 0.0
        %911 = vmatpush1.msra.mxu0 0.0
        %912 = vmatprep.subr.mxu0 0.0
        %913 = vmatpush1.msra.mxu0 0.0
        %914 = vmatprep.subr.mxu0 0.0
        %915 = vmatpush1.msra.mxu0 0.0
        %916 = vmatprep.subr.mxu0 0.0
        %917 = vmatpush1.msra.mxu0 0.0
        %918 = vmatprep.subr.mxu0 0.0
        %919 = vmatpush1.msra.mxu0 0.0
        %920 = vmatprep.subr.mxu0 0.0
        %921 = vmatpush1.msra.mxu0 0.0
        %922 = vmatprep.subr.mxu0 0.0
        %923 = vmatpush1.msra.mxu0 0.0
        %924 = vmatprep.subr.mxu0 0.0
        %925 = vmatpush1.msra.mxu0 0.0
        %926 = vmatprep.subr.mxu0 0.0
        %927 = vmatpush1.msra.mxu0 0.0
        %928 = vmatprep.subr.mxu0 0.0
        %929 = vmatpush1.msra.mxu0 0.0
        %930 = vmatprep.subr.mxu0 0.0
        %931 = vmatpush1.msra.mxu0 0.0
        %932 = vmatprep.subr.mxu0 0.0
        %933 = vmatpush1.msra.mxu0 0.0
        %934 = vmatprep.subr.mxu0 0.0
        %935 = vmatpush1.msra.mxu0 0.0
        %936 = vmatprep.subr.mxu0 0.0
        %937 = vmatpush1.msra.mxu0 %v829
        %938 = vmatprep.subr.mxu0 0.0
        %939 = vmatpush2.msra.mxu0 0.0
        %940 = vmatprep.subr.mxu0 0.0
        %941 = vmatpush2.msra.mxu0 0.0
        %942 = vmatprep.subr.mxu0 0.0
        %943 = vmatpush2.msra.mxu0 0.0
        %944 = vmatprep.subr.mxu0 0.0
        %945 = vmatpush2.msra.mxu0 0.0
        %946 = vmatprep.subr.mxu0 0.0
        %947 = vmatpush2.msra.mxu0 0.0
        %948 = vmatprep.subr.mxu0 0.0
        %949 = vmatpush2.msra.mxu0 0.0
        %950 = vmatprep.subr.mxu0 0.0
        %951 = vmatpush2.msra.mxu0 0.0
        %952 = vmatprep.subr.mxu0 0.0
        %953 = vmatpush2.msra.mxu0 0.0
        %954 = vmatprep.subr.mxu0 0.0
        %955 = vmatpush2.msra.mxu0 0.0
        %956 = vmatprep.subr.mxu0 0.0
        %957 = vmatpush2.msra.mxu0 0.0
        %958 = vmatprep.subr.mxu0 0.0
        %959 = vmatpush2.msra.mxu0 0.0
        %960 = vmatprep.subr.mxu0 0.0
        %961 = vmatpush2.msra.mxu0 0.0
        %962 = vmatprep.subr.mxu0 0.0
        %963 = vmatpush2.msra.mxu0 0.0
        %964 = vmatprep.subr.mxu0 0.0
        %965 = vmatpush2.msra.mxu0 0.0
        %966 = vmatprep.subr.mxu0 0.0
        %967 = vmatpush2.msra.mxu0 0.0
        %968 = vmatprep.subr.mxu0 0.0
        %969 = vmatpush2.msra.mxu0 0.0
        %970 = vmatprep.mubr.f32.mxu0 0.0
        %971 = vmatmul.mubr.f32.gmra.mxu0 %v904
        %v972 = vpop.f32.mrf.mxu0
        %v973 = vadd.f32 %v829, %v972
        %v974 = vpop.f32.mrf.mxu0
        %975 = vdwg.mxu0
        %v976 = vld [vmem:[#allocation9] sm:$0xff]
        %v977 = vld [vmem:[#allocation9 + $0x8] sm:$0xff]
        %v978 = vld [vmem:[#allocation9 + $0x10] sm:$0xff]
        %v979 = vld [vmem:[#allocation9 + $0x18] sm:$0xff]
        %v981 = vsel %vm459, %v900, 0
        %v984 = vsel %vm459, %v973, 0
        %986 = vmatprep.subr.mxu0 0.0
        %987 = vmatpush1.msra.mxu0 0.0
        %988 = vmatprep.subr.mxu0 0.0
        %989 = vmatpush1.msra.mxu0 0.0
        %990 = vmatprep.subr.mxu0 0.0
        %991 = vmatpush1.msra.mxu0 0.0
        %992 = vmatprep.subr.mxu0 0.0
        %993 = vmatpush1.msra.mxu0 0.0
        %994 = vmatprep.subr.mxu0 0.0
        %995 = vmatpush1.msra.mxu0 0.0
        %996 = vmatprep.subr.mxu0 0.0
        %997 = vmatpush1.msra.mxu0 0.0
        %998 = vmatprep.subr.mxu0 0.0
        %999 = vmatpush1.msra.mxu0 0.0
        %1000 = vmatprep.subr.mxu0 0.0
        %1001 = vmatpush1.msra.mxu0 0.0
        %1002 = vmatprep.subr.mxu0 0.0
        %1003 = vmatpush1.msra.mxu0 0.0
        %1004 = vmatprep.subr.mxu0 0.0
        %1005 = vmatpush1.msra.mxu0 0.0
        %1006 = vmatprep.subr.mxu0 0.0
        %1007 = vmatpush1.msra.mxu0 0.0
        %1008 = vmatprep.subr.mxu0 0.0
        %1009 = vmatpush1.msra.mxu0 0.0
        %1010 = vmatprep.subr.mxu0 0.0
        %1011 = vmatpush1.msra.mxu0 %v979
        %1012 = vmatprep.subr.mxu0 0.0
        %1013 = vmatpush1.msra.mxu0 %v978
        %1014 = vmatprep.subr.mxu0 0.0
        %1015 = vmatpush1.msra.mxu0 %v977
        %1016 = vmatprep.subr.mxu0 0.0
        %1017 = vmatpush1.msra.mxu0 %v976
        %1018 = vmatprep.subr.mxu0 0.0
        %1019 = vmatpush2.msra.mxu0 0.0
        %1020 = vmatprep.subr.mxu0 0.0
        %1021 = vmatpush2.msra.mxu0 0.0
        %1022 = vmatprep.subr.mxu0 0.0
        %1023 = vmatpush2.msra.mxu0 0.0
        %1024 = vmatprep.subr.mxu0 0.0
        %1025 = vmatpush2.msra.mxu0 0.0
        %1026 = vmatprep.subr.mxu0 0.0
        %1027 = vmatpush2.msra.mxu0 0.0
        %1028 = vmatprep.subr.mxu0 0.0
        %1029 = vmatpush2.msra.mxu0 0.0
        %1030 = vmatprep.subr.mxu0 0.0
        %1031 = vmatpush2.msra.mxu0 0.0
        %1032 = vmatprep.subr.mxu0 0.0
        %1033 = vmatpush2.msra.mxu0 0.0
        %1034 = vmatprep.subr.mxu0 0.0
        %1035 = vmatpush2.msra.mxu0 0.0
        %1036 = vmatprep.subr.mxu0 0.0
        %1037 = vmatpush2.msra.mxu0 0.0
        %1038 = vmatprep.subr.mxu0 0.0
        %1039 = vmatpush2.msra.mxu0 0.0
        %1040 = vmatprep.subr.mxu0 0.0
        %1041 = vmatpush2.msra.mxu0 0.0
        %1042 = vmatprep.subr.mxu0 0.0
        %1043 = vmatpush2.msra.mxu0 0.0
        %1044 = vmatprep.subr.mxu0 0.0
        %1045 = vmatpush2.msra.mxu0 0.0
        %1046 = vmatprep.subr.mxu0 0.0
        %1047 = vmatpush2.msra.mxu0 0.0
        %1048 = vmatprep.subr.mxu0 0.0
        %1049 = vmatpush2.msra.mxu0 0.0
        %1050 = vmatprep.mubr.f32.mxu0 0.0
        %1051 = vmatmul.mubr.f32.gmra.mxu0 %v981
        %v1052 = vpop.f32.mrf.mxu0
        %v1053 = vadd.f32 0.0, %v1052
        %v1054 = vpop.f32.mrf.mxu0
        %1055 = vmatprep.mubr.f32.mxu0 0.0
        %1056 = vmatmul.mubr.f32.gmra.mxu0 %v984
        %v1057 = vpop.f32.mrf.mxu0
        %v1058 = vadd.f32 0.0, %v1057
        %v1059 = vpop.f32.mrf.mxu0
        %1060 = vdwg.mxu0
        %v1061 = vmax.f32 %v1053, 0.0
        %v1062 = vmax.f32 %v1058, 0.0
        %v1063 = vmul.f32 %v1061, %v1061
        %v1064 = vmul.f32 %v1062, %v1062
        %v1065 = vsel %vm459, %v1063, 0.0
        %1066 = vadd.xlane.f32.xlu0 %v1065
        %v1067 = vpop.xlane.xlu0 %1066
        %v1068 = vsel %vm459, %v1064, 0.0
        %1069 = vadd.xlane.f32.xlu0 %v1068
        %v1070 = vpop.xlane.xlu0 %1069
        %v1071 = vmax.f32 %v1067, 1e-24
        %v1072 = vmax.f32 %v1070, 1e-24
        %v1073 = vrsqrt.pop %v1071
        %v1074 = vrsqrt.pop %v1072
        %v1075 = vmul.f32 %v1061, %v1073
        %v1076 = vmul.f32 %v1062, %v1074
        %1077 = vst.msk [vmem:[%s366] sm:$0xff] %vm459, %v1075
        %1078 = vst.msk [vmem:[%s366 + $0x8] sm:$0xff] %vm459, %v1076
        %s1079 = sand.u32 %s194, 1
        %s1080 = scalar_lea.sflag [#allocation5], %s1079
        %s1081 = sand.u32 %s194, 1
        %s1082 = smul.addr %s1081, 16
        %s1083 = scalar_lea.vmem [#allocation11], %s1082
        // Predicated region
        $region65: #{tpu_custom_call.1} parent=47 // pred_check
          %p1084 = pneg %p204
        $region66: #{tpu_custom_call.1} parent=47 // pred_check_branch
          %1086 = sbr.rel (%p1084) target = $region68
        $region67: #{tpu_custom_call.1} parent=47 // pred_region
          %s1087 = smul.u32 2, %s29
          %s1089 = ssub.s32 256, 256
          %1090 = vsyncadd %s1080, %s1089
          %s1091 = smul.addr %s1087, 128
          %s1092 = scalar_lea.hbm %s7, %s1091
          %s1093 = sshll.u32 %s1083, 4
          %s1094 = int_to_ptr.vmem [resolvable:$true] %s1093
          %1099 = dma.vmem_to_hbm [thread:$0]  %s1094, 256, %s1092, %s1080, 128, 128, 8
        $region68: #{tpu_custom_call.1} parent=47 // pred_fallthru
          _
      $region48: #{tpu_custom_call.1} parent=5 // pred_fallthru
        _
      %p1100 = scmp.le.s32.totalorder 2, %s24
      // Predicated region
      $region69: #{tpu_custom_call.1} parent=5 // pred_check
        %p1101 = pneg %p1100
      $region70: #{tpu_custom_call.1} parent=5 // pred_check_branch
        %1103 = sbr.rel (%p1101) target = $region72
      $region71: #{tpu_custom_call.1} parent=5 // pred_region
        %s1104 = ssub.s32 %s24, 2
        // Predicated region
        $region73: #{tpu_custom_call.1} parent=71 // pred_check
          %p1105 = pneg %p210
        $region74: #{tpu_custom_call.1} parent=71 // pred_check_branch
          %1107 = sbr.rel (%p1105) target = $region76
        $region75: #{tpu_custom_call.1} parent=71 // pred_region
          %s1108 = sand.u32 %s195, 1
          %s1109 = scalar_lea.sflag [#allocation5], %s1108
          %s1110 = sand.u32 %s195, 1
          %s1111 = smul.addr %s1110, 16
          %s1112 = scalar_lea.vmem [#allocation11], %s1111
          %1113 = dma.done %s1109, 256
        $region76: #{tpu_custom_call.1} parent=71 // pred_fallthru
          _
      $region72: #{tpu_custom_call.1} parent=5 // pred_fallthru
        _
    $region6: #{tpu_custom_call.1} parent=1 // loop_footer
      %s28 = sadd.s32 1, %s24
    $region7: #{tpu_custom_call.1} parent=1 // loop_footer_branch
      %23 = sbr.rel target = $region3
    $region8: #{tpu_custom_call.1} parent=1 // loop_exit
      _
    %1114 = vsyncpa [#allocation4], 1
    %s1115 = scalar_lea.sflag [#allocation4], 1
    %1116 = vsyncpa %s1115, 1
    %1117 = vsyncpa [#allocation7], 1
    %s1118 = scalar_lea.sflag [#allocation7], 1
    %1119 = vsyncpa %s1118, 1
    %1120 = vsyncpa [#allocation10], 1
    %1121 = vsyncpa [#allocation5], 1
    %s1122 = scalar_lea.sflag [#allocation5], 1
    %1123 = vsyncpa %s1122, 1

</llo_original>
